<compile_context>
chip_gen: v7x
topology: tpu7x:2x2x1
jax: 0.10.0
libtpu: 0.0.40
codegen_flags: <defaults>
</compile_context>

<pallas_src>
import math

import jax
import jax.numpy as jnp
from jax.experimental import pallas as pl
from jax.experimental.pallas import tpu as pltpu

LANE = 128
NEG_INF = -1e30


# ---------------------------------------------------------------------------
# helpers
# ---------------------------------------------------------------------------
def _lane_round(d):
    return max(LANE, ((d + LANE - 1) // LANE) * LANE)


def _pad_last(x, width, value=0.0):
    pad = width - x.shape[-1]
    if pad <= 0:
        return x
    cfg = [(0, 0)] * (x.ndim - 1) + [(0, pad)]
    return jnp.pad(x, cfg, constant_values=value)


def _pad_rows(x, height, value=0.0):
    pad = height - x.shape[0]
    if pad <= 0:
        return x
    cfg = [(0, pad)] + [(0, 0)] * (x.ndim - 1)
    return jnp.pad(x, cfg, constant_values=value)


def _pick_tile(n, target=512):
    """Largest tile <= target that divides n; multiples of 128 preferred."""
    if n <= target:
        return n
    for t in range(target, 127, -128):
        if n % t == 0:
            return t
    return n


def _cparams(dims):
    return pltpu.CompilerParams(
        dimension_semantics=dims,
        vmem_limit_bytes=48 * 1024 * 1024,   # safe on v5e/v6e (128 MiB) and v7x (64 MiB)
    )


# ---------------------------------------------------------------------------
# Kernel 1: feature transform  XWs = D^{-1/2} ⊙ (X @ W)   (bf16 output)
# ---------------------------------------------------------------------------
def transform_kernel(x_ref, w_ref, dis_ref, o_ref):
    xw = jnp.dot(x_ref[...], w_ref[...], preferred_element_type=jnp.float32)
    o_ref[...] = (xw * dis_ref[...]).astype(o_ref.dtype)


def transform(x, w, dis, tm=512):
    n, f_in = x.shape
    f_out = w.shape[1]
    tm = _pick_tile(n, tm)
    return pl.pallas_call(
        transform_kernel,
        out_shape=jax.ShapeDtypeStruct((n, f_out), jnp.bfloat16),
        grid=(n // tm,),
        in_specs=[
            pl.BlockSpec((tm, f_in), lambda i: (i, 0)),
            pl.BlockSpec((f_in, f_out), lambda i: (0, 0)),
            pl.BlockSpec((tm, 1), lambda i: (i, 0)),
        ],
        out_specs=pl.BlockSpec((tm, f_out), lambda i: (i, 0)),
        compiler_params=_cparams(("parallel",)),
    )(x, w, dis)


# ---------------------------------------------------------------------------
# Kernel 2: aggregation  H = relu(D^{-1/2} ⊙ (A @ XWs) + b)
#   grid = (row tiles [parallel], k tiles [arbitrary, last]); f32 accumulator.
# ---------------------------------------------------------------------------
def aggregate_kernel(a_ref, xw_ref, dis_ref, b_ref, o_ref, acc_ref):
    k = pl.program_id(1)

    @pl.when(k == 0)
    def _():
        acc_ref[...] = jnp.zeros_like(acc_ref)

    acc_ref[...] += jnp.dot(a_ref[...], xw_ref[...],
                            preferred_element_type=jnp.float32)

    @pl.when(k == pl.num_programs(1) - 1)
    def _():
        o_ref[...] = jnp.maximum(
            dis_ref[...] * acc_ref[...] + b_ref[...], 0.0
        ).astype(o_ref.dtype)


def aggregate(a_bf16, xw_bf16, dis, b, tm=512, tk=512):
    n = a_bf16.shape[0]
    f_out = xw_bf16.shape[1]
    tm = _pick_tile(n, tm)
    tk = _pick_tile(n, tk)
    b2 = b.reshape(1, f_out)
    return pl.pallas_call(
        aggregate_kernel,
        out_shape=jax.ShapeDtypeStruct((n, f_out), jnp.float32),
        grid=(n // tm, n // tk),
        in_specs=[
            pl.BlockSpec((tm, tk), lambda i, k: (i, k)),
            pl.BlockSpec((tk, f_out), lambda i, k: (k, 0)),
            pl.BlockSpec((tm, 1), lambda i, k: (i, 0)),
            pl.BlockSpec((1, f_out), lambda i, k: (0, 0)),
        ],
        out_specs=pl.BlockSpec((tm, f_out), lambda i, k: (i, 0)),
        scratch_shapes=[pltpu.VMEM((tm, f_out), jnp.float32)],
        compiler_params=_cparams(("parallel", "arbitrary")),
    )(a_bf16, xw_bf16, dis, b2)


# ---------------------------------------------------------------------------
# Kernel 3: cluster assignment  S = softmax(H @ Wl^T + bl)
#   Padded class columns carry a -1e30 bias => exactly zero probability.
# ---------------------------------------------------------------------------
def assign_kernel(h_ref, w_ref, b_ref, o_ref):
    logits = jnp.dot(h_ref[...], w_ref[...],
                     preferred_element_type=jnp.float32) + b_ref[...]
    logits = logits - jnp.max(logits, axis=1, keepdims=True)
    e = jnp.exp(logits)
    inv = pl.reciprocal(jnp.sum(e, axis=1, keepdims=True), approx=True)
    o_ref[...] = e * inv


def assign(h, w_lin_t_pad, b_lin_pad, tm=512):
    n, hid = h.shape
    c_pad = w_lin_t_pad.shape[1]
    tm = _pick_tile(n, tm)
    b2 = b_lin_pad.reshape(1, c_pad)
    return pl.pallas_call(
        assign_kernel,
        out_shape=jax.ShapeDtypeStruct((n, c_pad), jnp.float32),
        grid=(n // tm,),
        in_specs=[
            pl.BlockSpec((tm, hid), lambda i: (i, 0)),
            pl.BlockSpec((hid, c_pad), lambda i: (0, 0)),
            pl.BlockSpec((1, c_pad), lambda i: (0, 0)),
        ],
        out_specs=pl.BlockSpec((tm, c_pad), lambda i: (i, 0)),
        compiler_params=_cparams(("parallel",)),
    )(h, w_lin_t_pad, b2)


# ---------------------------------------------------------------------------
# Kernel 4: spectral partials  out[i] = sum(S_i ⊙ (A_i: @ S))
#   trace(S^T A S) = sum_i out[i].  Per-row-block partials are written into a
#   full (8,128) vreg tile so output blocks are spec-compliant & unmasked.
# ---------------------------------------------------------------------------
def spectral_kernel(a_ref, sk_ref, si_ref, o_ref, acc_ref):
    k = pl.program_id(1)

    @pl.when(k == 0)
    def _():
        acc_ref[...] = jnp.zeros_like(acc_ref)

    a_s = jnp.dot(a_ref[...], sk_ref[...], preferred_element_type=jnp.float32)
    acc_ref[...] += si_ref[...].astype(jnp.float32) * a_s

    @pl.when(k == pl.num_programs(1) - 1)
    def _():
        o_ref[...] = jnp.zeros(o_ref.shape, jnp.float32) + jnp.sum(acc_ref[...])


def spectral_partials(a_bf16, s_bf16, tm=512, tk=512):
    n = a_bf16.shape[0]
    c_pad = s_bf16.shape[1]
    tm = _pick_tile(n, tm)
    tk = _pick_tile(n, tk)
    ni = n // tm
    return pl.pallas_call(
        spectral_kernel,
        out_shape=jax.ShapeDtypeStruct((ni, 8, LANE), jnp.float32),
        grid=(ni, n // tk),
        in_specs=[
            pl.BlockSpec((tm, tk), lambda i, k: (i, k)),
            pl.BlockSpec((tk, c_pad), lambda i, k: (k, 0)),
            pl.BlockSpec((tm, c_pad), lambda i, k: (i, 0)),
        ],
        out_specs=pl.BlockSpec((1, 8, LANE), lambda i, k: (i, 0, 0)),
        scratch_shapes=[pltpu.VMEM((tm, c_pad), jnp.float32)],
        compiler_params=_cparams(("parallel", "arbitrary")),
    )(a_bf16, s_bf16, s_bf16)


# ---------------------------------------------------------------------------
# Full forward (calibrate=None path) — fully jit-able, no host syncs.
# ---------------------------------------------------------------------------
def dmon_forward(features_pad, adj, params, n_classes):
    # TODO(synk): calibrate branch (KLDivLoss with calib_idx gather + external M)
    #             not implemented.
    # TODO(synk): when A fits VMEM (N ≲ 3-4k), fuse layers+head with an
    #             A-resident VMEM copy so the adjacency is read from HBM once.
    n = adj.shape[0]
    num_nodes = float(n)

    degrees = jnp.sum(adj, axis=0)                       # in-degrees (symmetric)
    num_edges = jnp.sum(adj)                             # traced scalar, no host sync
    d_inv_sqrt = (1.0 / jnp.sqrt(jnp.maximum(degrees, 1.0))).reshape(n, 1)

    a_bf16 = adj.astype(jnp.bfloat16)                    # 0/1 entries: exact in bf16

    h = features_pad
    for (w, b) in params["gcn"]:
        xw = transform(h, w, d_inv_sqrt)                 # (N, Hpad) bf16
        h = aggregate(a_bf16, xw, d_inv_sqrt, b)         # (N, Hpad) f32

    s_pad = assign(h, params["lin_w_t"], params["lin_b"])  # (N, Cpad) f32

    # ---- DMoN losses (small vector/scalar math in plain JAX glue) ----
    s_bf = s_pad.astype(jnp.bfloat16)
    partials = spectral_partials(a_bf16, s_bf)
    trace_sas = jnp.sum(partials[:, 0, 0])               # trace(S^T A S)

    cluster_sizes = jnp.sum(s_pad, axis=0)               # padded cols are exactly 0
    nc = degrees @ s_pad                                 # (Cpad,)
    trace_norm = jnp.sum(nc * nc) / 2.0 / num_edges      # trace of normalizer

    spectral_loss = -(trace_sas - trace_norm) / 2.0 / num_edges
    collapse_loss = (jnp.sqrt(jnp.sum(cluster_sizes * cluster_sizes))
                     / num_nodes * math.sqrt(n_classes) - 1.0)
    loss = spectral_loss + collapse_loss
    return loss, s_pad[:, :n_classes]


# ---------------------------------------------------------------------------
# Parameter construction (PyTorch init scheme) + lane padding
# ---------------------------------------------------------------------------
def make_params(key, in_feats, n_hidden, n_classes, n_layers):
    keys = jax.random.split(key, n_layers + 1)
    glorot = jax.nn.initializers.glorot_uniform()
    gcn = []
    dims = [in_feats] + [n_hidden] * n_layers
    for i in range(n_layers):
        w = glorot(keys[i], (dims[i], dims[i + 1]), jnp.float32)
        b = jnp.zeros((dims[i + 1],), jnp.float32)
        gcn.append((w, b))
    # nn.Linear(n_hidden, n_classes): weight (C, H) orthogonal, bias zeros.
    lin_w = jax.nn.initializers.orthogonal()(keys[-1], (n_classes, n_hidden),
                                             jnp.float32)
    lin_b = jnp.zeros((n_classes,), jnp.float32)
    return {"gcn": gcn, "lin_w": lin_w, "lin_b": lin_b}


def pad_params(params, in_feats, n_hidden, n_classes):
    """Zero-pad weights to multiples of 128 lanes so every activation store is
    an unmasked 128-lane vst.  Padded hidden columns stay exactly zero through
    relu; padded class columns get a -1e30 bias => zero softmax probability."""
    in_p = _lane_round(in_feats)
    hid_p = _lane_round(n_hidden)
    cls_p = _lane_round(n_classes)
    gcn = []
    for li, (w, b) in enumerate(params["gcn"]):
        rows = in_p if li == 0 else hid_p
        gcn.append((_pad_rows(_pad_last(w, hid_p), rows), _pad_last(b, hid_p)))
    wl_t = _pad_rows(_pad_last(params["lin_w"].T, cls_p), hid_p)   # (Hpad, Cpad)
    bl = jnp.full((cls_p,), NEG_INF, jnp.float32).at[:n_classes].set(params["lin_b"])
    return {"gcn": gcn, "lin_w_t": wl_t, "lin_b": bl}


if __name__ == "__main__":
    N = 64            # nodes
    IN_FEATS = 16
    N_HIDDEN = 32
    N_CLASSES = 8
    N_LAYERS = 2

    key = jax.random.PRNGKey(0)
    k_adj, k_feat, k_param = jax.random.split(key, 3)

    # random symmetric 0/1 adjacency, no self loops
    u = jax.random.uniform(k_adj, (N, N))
    a = (u < 0.15).astype(jnp.float32)
    a = jnp.maximum(a, a.T)
    a = a * (1.0 - jnp.eye(N, dtype=jnp.float32))

    features = jax.random.normal(k_feat, (N, IN_FEATS), jnp.float32)
    features_pad = _pad_last(features, _lane_round(IN_FEATS))

    params = pad_params(
        make_params(k_param, IN_FEATS, N_HIDDEN, N_CLASSES, N_LAYERS),
        IN_FEATS, N_HIDDEN, N_CLASSES)

    fwd = jax.jit(dmon_forward, static_argnames=("n_classes",))
    loss, soft_assignment = fwd(features_pad, a, params, n_classes=N_CLASSES)
    jax.block_until_ready((loss, soft_assignment))

    assert soft_assignment.shape == (N, N_CLASSES)
    assert bool(jnp.isfinite(loss))
    print("KERNEL_OK")
</pallas_src>

<mosaic_0001>
module attributes {stable_mosaic.version = 11 : i64} {
  func.func @transform_kernel(%arg0: i32, %arg1: memref<64x128xf32, #tpu.memory_space<vmem>>, %arg2: memref<128x128xf32, #tpu.memory_space<vmem>>, %arg3: memref<64x1xf32, #tpu.memory_space<vmem>>, %arg4: memref<64x128xbf16, #tpu.memory_space<vmem>>) attributes {dimension_semantics = [#tpu.dimension_semantics<parallel>], iteration_bounds = array<i64: 1>, scalar_prefetch = 0 : i64, scratch_operands = 0 : i64, tpu.core_type = #tpu.core_type<tc>, window_params = [{transform_indices = @transform_0, window_bounds = array<i64: 64, 128>}, {pipeline_mode = #tpu.pipeline_mode<synchronous>, transform_indices = @transform_1, window_bounds = array<i64: 128, 128>}, {transform_indices = @transform_2, window_bounds = array<i64: 64, 1>}, {transform_indices = @transform_3, window_bounds = array<i64: 64, 128>}]} {
    %c0 = arith.constant 0 : index
    %c0_0 = arith.constant 0 : index
    %0 = vector.load %arg1[%c0, %c0_0] : memref<64x128xf32, #tpu.memory_space<vmem>>, vector<64x128xf32>
    %c0_1 = arith.constant 0 : index
    %c0_2 = arith.constant 0 : index
    %1 = vector.load %arg2[%c0_1, %c0_2] : memref<128x128xf32, #tpu.memory_space<vmem>>, vector<128x128xf32>
    %cst = arith.constant dense<0.000000e+00> : vector<64x128xf32>
    %2 = tpu.matmul %0, %1, %cst {dimension_numbers = #tpu.dot_dimension_numbers<[1], [0], [0], [1], [0, 0, 1, 1], [], []>} : vector<64x128xf32>, vector<128x128xf32>, vector<64x128xf32> -> vector<64x128xf32>
    %c0_3 = arith.constant 0 : index
    %c0_4 = arith.constant 0 : index
    %3 = vector.load %arg3[%c0_3, %c0_4] : memref<64x1xf32, #tpu.memory_space<vmem>>, vector<64x1xf32>
    %4 = vector.broadcast %3 : vector<64x1xf32> to vector<64x128xf32>
    %5 = arith.mulf %2, %4 : vector<64x128xf32>
    %6 = arith.truncf %5 : vector<64x128xf32> to vector<64x128xbf16>
    %c0_5 = arith.constant 0 : index
    %c0_6 = arith.constant 0 : index
    %7 = vector.load %arg4[%c0_5, %c0_6] : memref<64x128xbf16, #tpu.memory_space<vmem>>, vector<64x128xbf16>
    tpu.vector_store %arg4[%c0_5, %c0_6], %6 {strides = array<i32>} : memref<64x128xbf16, #tpu.memory_space<vmem>>, vector<64x128xbf16>,
    return
  }
  func.func @transform_0(%arg0: i32) -> (i32, i32) {
    %c0_i32 = arith.constant 0 : i32
    %c0_i32_0 = arith.constant 0 : i32
    return %arg0, %c0_i32 : i32, i32
  }
  func.func @transform_1(%arg0: i32) -> (i32, i32) {
    %c0_i32 = arith.constant 0 : i32
    %c0_i32_0 = arith.constant 0 : i32
    %c0_i32_1 = arith.constant 0 : i32
    return %c0_i32, %c0_i32_0 : i32, i32
  }
  func.func @transform_2(%arg0: i32) -> (i32, i32) {
    %c0_i32 = arith.constant 0 : i32
    %c0_i32_0 = arith.constant 0 : i32
    return %arg0, %c0_i32 : i32, i32
  }
  func.func @transform_3(%arg0: i32) -> (i32, i32) {
    %c0_i32 = arith.constant 0 : i32
    %c0_i32_0 = arith.constant 0 : i32
    return %arg0, %c0_i32 : i32, i32
  }
}

module attributes {stable_mosaic.version = 11 : i64} {
  func.func @assign_kernel(%arg0: i32, %arg1: memref<64x128xf32, #tpu.memory_space<vmem>>, %arg2: memref<128x128xf32, #tpu.memory_space<vmem>>, %arg3: memref<1x128xf32, #tpu.memory_space<vmem>>, %arg4: memref<64x128xf32, #tpu.memory_space<vmem>>) attributes {dimension_semantics = [#tpu.dimension_semantics<parallel>], iteration_bounds = array<i64: 1>, scalar_prefetch = 0 : i64, scratch_operands = 0 : i64, tpu.core_type = #tpu.core_type<tc>, window_params = [{transform_indices = @transform_0, window_bounds = array<i64: 64, 128>}, {pipeline_mode = #tpu.pipeline_mode<synchronous>, transform_indices = @transform_1, window_bounds = array<i64: 128, 128>}, {pipeline_mode = #tpu.pipeline_mode<synchronous>, transform_indices = @transform_2, window_bounds = array<i64: 1, 128>}, {transform_indices = @transform_3, window_bounds = array<i64: 64, 128>}]} {
    %c0 = arith.constant 0 : index
    %c0_0 = arith.constant 0 : index
    %0 = vector.load %arg1[%c0, %c0_0] : memref<64x128xf32, #tpu.memory_space<vmem>>, vector<64x128xf32>
    %c0_1 = arith.constant 0 : index
    %c0_2 = arith.constant 0 : index
    %1 = vector.load %arg2[%c0_1, %c0_2] : memref<128x128xf32, #tpu.memory_space<vmem>>, vector<128x128xf32>
    %cst = arith.constant dense<0.000000e+00> : vector<64x128xf32>
    %2 = tpu.matmul %0, %1, %cst {dimension_numbers = #tpu.dot_dimension_numbers<[1], [0], [0], [1], [0, 0, 1, 1], [], []>} : vector<64x128xf32>, vector<128x128xf32>, vector<64x128xf32> -> vector<64x128xf32>
    %c0_3 = arith.constant 0 : index
    %c0_4 = arith.constant 0 : index
    %3 = vector.load %arg3[%c0_3, %c0_4] : memref<1x128xf32, #tpu.memory_space<vmem>>, vector<1x128xf32>
    %4 = vector.broadcast %3 : vector<1x128xf32> to vector<64x128xf32>
    %5 = arith.addf %2, %4 : vector<64x128xf32>
    %cst_5 = arith.constant dense<0xFF800000> : vector<64xf32>
    %6 = vector.multi_reduction <maximumf>, %5, %cst_5 [1] : vector<64x128xf32> to vector<64xf32>
    %7 = vector.shape_cast %6 : vector<64xf32> to vector<64x1xf32>
    %8 = vector.broadcast %7 : vector<64x1xf32> to vector<64x128xf32>
    %9 = arith.subf %5, %8 : vector<64x128xf32>
    %10 = math.exp %9 : vector<64x128xf32>
    %cst_6 = arith.constant dense<0.000000e+00> : vector<64xf32>
    %11 = vector.multi_reduction <add>, %10, %cst_6 [1] : vector<64x128xf32> to vector<64xf32>
    %12 = vector.shape_cast %11 : vector<64xf32> to vector<64x1xf32>
    %13 = tpu.reciprocal %12 {approx = true} : vector<64x1xf32> -> vector<64x1xf32>
    %14 = vector.broadcast %13 : vector<64x1xf32> to vector<64x128xf32>
    %15 = arith.mulf %10, %14 : vector<64x128xf32>
    %c0_7 = arith.constant 0 : index
    %c0_8 = arith.constant 0 : index
    %16 = vector.load %arg4[%c0_7, %c0_8] : memref<64x128xf32, #tpu.memory_space<vmem>>, vector<64x128xf32>
    tpu.vector_store %arg4[%c0_7, %c0_8], %15 {strides = array<i32>} : memref<64x128xf32, #tpu.memory_space<vmem>>, vector<64x128xf32>,
    return
  }
  func.func @transform_0(%arg0: i32) -> (i32, i32) {
    %c0_i32 = arith.constant 0 : i32
    %c0_i32_0 = arith.constant 0 : i32
    return %arg0, %c0_i32 : i32, i32
  }
  func.func @transform_1(%arg0: i32) -> (i32, i32) {
    %c0_i32 = arith.constant 0 : i32
    %c0_i32_0 = arith.constant 0 : i32
    %c0_i32_1 = arith.constant 0 : i32
    return %c0_i32, %c0_i32_0 : i32, i32
  }
  func.func @transform_2(%arg0: i32) -> (i32, i32) {
    %c0_i32 = arith.constant 0 : i32
    %c0_i32_0 = arith.constant 0 : i32
    %c0_i32_1 = arith.constant 0 : i32
    return %c0_i32, %c0_i32_0 : i32, i32
  }
  func.func @transform_3(%arg0: i32) -> (i32, i32) {
    %c0_i32 = arith.constant 0 : i32
    %c0_i32_0 = arith.constant 0 : i32
    return %arg0, %c0_i32 : i32, i32
  }
}

module attributes {stable_mosaic.version = 11 : i64} {
  func.func @aggregate_kernel(%arg0: i32, %arg1: i32, %arg2: memref<64x64xbf16, #tpu.memory_space<vmem>>, %arg3: memref<64x128xbf16, #tpu.memory_space<vmem>>, %arg4: memref<64x1xf32, #tpu.memory_space<vmem>>, %arg5: memref<1x128xf32, #tpu.memory_space<vmem>>, %arg6: memref<64x128xf32, #tpu.memory_space<vmem>>, %arg7: memref<64x128xf32, #tpu.memory_space<vmem>>) attributes {dimension_semantics = [#tpu.dimension_semantics<parallel>, #tpu.dimension_semantics<arbitrary>], iteration_bounds = array<i64: 1, 1>, scalar_prefetch = 0 : i64, scratch_operands = 1 : i64, tpu.core_type = #tpu.core_type<tc>, window_params = [{transform_indices = @transform_0, window_bounds = array<i64: 64, 64>}, {transform_indices = @transform_1, window_bounds = array<i64: 64, 128>}, {transform_indices = @transform_2, window_bounds = array<i64: 64, 1>}, {pipeline_mode = #tpu.pipeline_mode<synchronous>, transform_indices = @transform_3, window_bounds = array<i64: 1, 128>}, {transform_indices = @transform_4, window_bounds = array<i64: 64, 128>}]} {
    %c0_i32 = arith.constant 0 : i32
    %0 = arith.cmpi eq, %arg1, %c0_i32 : i32
    %1 = arith.extui %0 : i1 to i32
    %c0_i32_0 = arith.constant 0 : i32
    %2 = arith.cmpi ne, %1, %c0_i32_0 : i32
    scf.if %2 {
      %cst_10 = arith.constant 0.000000e+00 : f32
      %12 = vector.broadcast %cst_10 : f32 to vector<64x128xf32>
      %c0_11 = arith.constant 0 : index
      %c0_12 = arith.constant 0 : index
      %13 = vector.load %arg7[%c0_11, %c0_12] : memref<64x128xf32, #tpu.memory_space<vmem>>, vector<64x128xf32>
      tpu.vector_store %arg7[%c0_11, %c0_12], %12 {strides = array<i32>} : memref<64x128xf32, #tpu.memory_space<vmem>>, vector<64x128xf32>,
    } else {
    }
    %c0 = arith.constant 0 : index
    %c0_1 = arith.constant 0 : index
    %3 = vector.load %arg7[%c0, %c0_1] : memref<64x128xf32, #tpu.memory_space<vmem>>, vector<64x128xf32>
    %c0_2 = arith.constant 0 : index
    %c0_3 = arith.constant 0 : index
    %4 = vector.load %arg2[%c0_2, %c0_3] : memref<64x64xbf16, #tpu.memory_space<vmem>>, vector<64x64xbf16>
    %c0_4 = arith.constant 0 : index
    %c0_5 = arith.constant 0 : index
    %5 = vector.load %arg3[%c0_4, %c0_5] : memref<64x128xbf16, #tpu.memory_space<vmem>>, vector<64x128xbf16>
    %cst = arith.constant dense<0.000000e+00> : vector<64x128xf32>
    %6 = tpu.matmul %4, %5, %cst {dimension_numbers = #tpu.dot_dimension_numbers<[1], [0], [0], [1], [0, 0, 1, 1], [], []>} : vector<64x64xbf16>, vector<64x128xbf16>, vector<64x128xf32> -> vector<64x128xf32>
    %7 = arith.addf %3, %6 : vector<64x128xf32>
    %c0_6 = arith.constant 0 : index
    %c0_7 = arith.constant 0 : index
    %8 = vector.load %arg7[%c0_6, %c0_7] : memref<64x128xf32, #tpu.memory_space<vmem>>, vector<64x128xf32>
    tpu.vector_store %arg7[%c0_6, %c0_7], %7 {strides = array<i32>} : memref<64x128xf32, #tpu.memory_space<vmem>>, vector<64x128xf32>,
    %c0_i32_8 = arith.constant 0 : i32
    %9 = arith.cmpi eq, %arg1, %c0_i32_8 : i32
    %10 = arith.extui %9 : i1 to i32
    %c0_i32_9 = arith.constant 0 : i32
    %11 = arith.cmpi ne, %10, %c0_i32_9 : i32
    scf.if %11 {
      %c0_10 = arith.constant 0 : index
      %c0_11 = arith.constant 0 : index
      %12 = vector.load %arg4[%c0_10, %c0_11] : memref<64x1xf32, #tpu.memory_space<vmem>>, vector<64x1xf32>
      %c0_12 = arith.constant 0 : index
      %c0_13 = arith.constant 0 : index
      %13 = vector.load %arg7[%c0_12, %c0_13] : memref<64x128xf32, #tpu.memory_space<vmem>>, vector<64x128xf32>
      %14 = vector.broadcast %12 : vector<64x1xf32> to vector<64x128xf32>
      %15 = arith.mulf %14, %13 : vector<64x128xf32>
      %c0_14 = arith.constant 0 : index
      %c0_15 = arith.constant 0 : index
      %16 = vector.load %arg5[%c0_14, %c0_15] : memref<1x128xf32, #tpu.memory_space<vmem>>, vector<1x128xf32>
      %17 = vector.broadcast %16 : vector<1x128xf32> to vector<64x128xf32>
      %18 = arith.addf %15, %17 : vector<64x128xf32>
      %cst_16 = arith.constant 0.000000e+00 : f32
      %19 = vector.broadcast %cst_16 : f32 to vector<64x128xf32>
      %20 = arith.maximumf %18, %19 : vector<64x128xf32>
      %c0_17 = arith.constant 0 : index
      %c0_18 = arith.constant 0 : index
      %21 = vector.load %arg6[%c0_17, %c0_18] : memref<64x128xf32, #tpu.memory_space<vmem>>, vector<64x128xf32>
      tpu.vector_store %arg6[%c0_17, %c0_18], %20 {strides = array<i32>} : memref<64x128xf32, #tpu.memory_space<vmem>>, vector<64x128xf32>,
    } else {
    }
    return
  }
  func.func @transform_0(%arg0: i32, %arg1: i32) -> (i32, i32) {
    %c0_i32 = arith.constant 0 : i32
    return %arg0, %arg1 : i32, i32
  }
  func.func @transform_1(%arg0: i32, %arg1: i32) -> (i32, i32) {
    %c0_i32 = arith.constant 0 : i32
    %c0_i32_0 = arith.constant 0 : i32
    return %arg1, %c0_i32 : i32, i32
  }
  func.func @transform_2(%arg0: i32, %arg1: i32) -> (i32, i32) {
    %c0_i32 = arith.constant 0 : i32
    %c0_i32_0 = arith.constant 0 : i32
    return %arg0, %c0_i32 : i32, i32
  }
  func.func @transform_3(%arg0: i32, %arg1: i32) -> (i32, i32) {
    %c0_i32 = arith.constant 0 : i32
    %c0_i32_0 = arith.constant 0 : i32
    %c0_i32_1 = arith.constant 0 : i32
    return %c0_i32, %c0_i32_0 : i32, i32
  }
  func.func @transform_4(%arg0: i32, %arg1: i32) -> (i32, i32) {
    %c0_i32 = arith.constant 0 : i32
    %c0_i32_0 = arith.constant 0 : i32
    return %arg0, %c0_i32 : i32, i32
  }
}

module attributes {stable_mosaic.version = 11 : i64} {
  func.func @spectral_kernel(%arg0: i32, %arg1: i32, %arg2: memref<64x64xbf16, #tpu.memory_space<vmem>>, %arg3: memref<64x128xbf16, #tpu.memory_space<vmem>>, %arg4: memref<64x128xbf16, #tpu.memory_space<vmem>>, %arg5: memref<1x8x128xf32, #tpu.memory_space<vmem>>, %arg6: memref<64x128xf32, #tpu.memory_space<vmem>>) attributes {dimension_semantics = [#tpu.dimension_semantics<parallel>, #tpu.dimension_semantics<arbitrary>], iteration_bounds = array<i64: 1, 1>, scalar_prefetch = 0 : i64, scratch_operands = 1 : i64, tpu.core_type = #tpu.core_type<tc>, window_params = [{transform_indices = @transform_0, window_bounds = array<i64: 64, 64>}, {transform_indices = @transform_1, window_bounds = array<i64: 64, 128>}, {transform_indices = @transform_2, window_bounds = array<i64: 64, 128>}, {transform_indices = @transform_3, window_bounds = array<i64: 1, 8, 128>}]} {
    %c0_i32 = arith.constant 0 : i32
    %0 = arith.cmpi eq, %arg1, %c0_i32 : i32
    %1 = arith.extui %0 : i1 to i32
    %c0_i32_0 = arith.constant 0 : i32
    %2 = arith.cmpi ne, %1, %c0_i32_0 : i32
    scf.if %2 {
      %cst_12 = arith.constant 0.000000e+00 : f32
      %15 = vector.broadcast %cst_12 : f32 to vector<64x128xf32>
      %c0_13 = arith.constant 0 : index
      %c0_14 = arith.constant 0 : index
      %16 = vector.load %arg6[%c0_13, %c0_14] : memref<64x128xf32, #tpu.memory_space<vmem>>, vector<64x128xf32>
      tpu.vector_store %arg6[%c0_13, %c0_14], %15 {strides = array<i32>} : memref<64x128xf32, #tpu.memory_space<vmem>>, vector<64x128xf32>,
    } else {
    }
    %c0 = arith.constant 0 : index
    %c0_1 = arith.constant 0 : index
    %3 = vector.load %arg2[%c0, %c0_1] : memref<64x64xbf16, #tpu.memory_space<vmem>>, vector<64x64xbf16>
    %c0_2 = arith.constant 0 : index
    %c0_3 = arith.constant 0 : index
    %4 = vector.load %arg3[%c0_2, %c0_3] : memref<64x128xbf16, #tpu.memory_space<vmem>>, vector<64x128xbf16>
    %cst = arith.constant dense<0.000000e+00> : vector<64x128xf32>
    %5 = tpu.matmul %3, %4, %cst {dimension_numbers = #tpu.dot_dimension_numbers<[1], [0], [0], [1], [0, 0, 1, 1], [], []>} : vector<64x64xbf16>, vector<64x128xbf16>, vector<64x128xf32> -> vector<64x128xf32>
    %c0_4 = arith.constant 0 : index
    %c0_5 = arith.constant 0 : index
    %6 = vector.load %arg6[%c0_4, %c0_5] : memref<64x128xf32, #tpu.memory_space<vmem>>, vector<64x128xf32>
    %c0_6 = arith.constant 0 : index
    %c0_7 = arith.constant 0 : index
    %7 = vector.load %arg4[%c0_6, %c0_7] : memref<64x128xbf16, #tpu.memory_space<vmem>>, vector<64x128xbf16>
    %8 = arith.extf %7 : vector<64x128xbf16> to vector<64x128xf32>
    %9 = arith.mulf %8, %5 : vector<64x128xf32>
    %10 = arith.addf %6, %9 : vector<64x128xf32>
    %c0_8 = arith.constant 0 : index
    %c0_9 = arith.constant 0 : index
    %11 = vector.load %arg6[%c0_8, %c0_9] : memref<64x128xf32, #tpu.memory_space<vmem>>, vector<64x128xf32>
    tpu.vector_store %arg6[%c0_8, %c0_9], %10 {strides = array<i32>} : memref<64x128xf32, #tpu.memory_space<vmem>>, vector<64x128xf32>,
    %c0_i32_10 = arith.constant 0 : i32
    %12 = arith.cmpi eq, %arg1, %c0_i32_10 : i32
    %13 = arith.extui %12 : i1 to i32
    %c0_i32_11 = arith.constant 0 : i32
    %14 = arith.cmpi ne, %13, %c0_i32_11 : i32
    scf.if %14 {
      %cst_12 = arith.constant 0.000000e+00 : f32
      %15 = vector.broadcast %cst_12 : f32 to vector<1x8x128xf32>
      %c0_13 = arith.constant 0 : index
      %c0_14 = arith.constant 0 : index
      %16 = vector.load %arg6[%c0_13, %c0_14] : memref<64x128xf32, #tpu.memory_space<vmem>>, vector<64x128xf32>
      %17 = vector.shape_cast %16 : vector<64x128xf32> to vector<1x64x128xf32>
      %cst_15 = arith.constant dense<0.000000e+00> : vector<1xf32>
      %18 = vector.multi_reduction <add>, %17, %cst_15 [1, 2] : vector<1x64x128xf32> to vector<1xf32>
      %19 = vector.shape_cast %18 : vector<1xf32> to vector<1x1x1xf32>
      %20 = vector.extract %19[0, 0, 0] : f32 from vector<1x1x1xf32>
      %21 = vector.broadcast %20 : f32 to vector<1x8x128xf32>
      %22 = arith.addf %15, %21 : vector<1x8x128xf32>
      %c0_16 = arith.constant 0 : index
      %c0_17 = arith.constant 0 : index
      %c0_18 = arith.constant 0 : index
      %23 = vector.load %arg5[%c0_16, %c0_17, %c0_18] : memref<1x8x128xf32, #tpu.memory_space<vmem>>, vector<1x8x128xf32>
      tpu.vector_store %arg5[%c0_16, %c0_17, %c0_18], %22 {strides = array<i32>} : memref<1x8x128xf32, #tpu.memory_space<vmem>>, vector<1x8x128xf32>,
    } else {
    }
    return
  }
  func.func @transform_0(%arg0: i32, %arg1: i32) -> (i32, i32) {
    %c0_i32 = arith.constant 0 : i32
    return %arg0, %arg1 : i32, i32
  }
  func.func @transform_1(%arg0: i32, %arg1: i32) -> (i32, i32) {
    %c0_i32 = arith.constant 0 : i32
    %c0_i32_0 = arith.constant 0 : i32
    return %arg1, %c0_i32 : i32, i32
  }
  func.func @transform_2(%arg0: i32, %arg1: i32) -> (i32, i32) {
    %c0_i32 = arith.constant 0 : i32
    %c0_i32_0 = arith.constant 0 : i32
    return %arg0, %c0_i32 : i32, i32
  }
  func.func @transform_3(%arg0: i32, %arg1: i32) -> (i32, i32, i32) {
    %c0_i32 = arith.constant 0 : i32
    %c0_i32_0 = arith.constant 0 : i32
    %c0_i32_1 = arith.constant 0 : i32
    return %arg0, %c0_i32, %c0_i32_0 : i32, i32, i32
  }
}

</mosaic_0001>

<llo_original>
// kernel: dmon_forward.10
$region0: #{dmon_forward.10}
  #allocation0 [shape = 'u32[]', space=smem, size = 0x4, offset = 0x4, fixed_abs, tag = 'smem constant byte address 0x4 - core index']
  #allocation1 [shape = 'u32[144,128]{1,0:T(1,128)}', space=vmem, size = 0x12000, scoped, tag = 'internal scratch']
  %s0 = inlined_call_operand.vmem [shape: f32[64,128], index: 0, kind: input, shape index: {}]
  %s1 = inlined_call_operand.vmem [shape: f32[128,128], index: 1, kind: input, shape index: {}]
  %s2 = inlined_call_operand.vmem [shape: f32[1,128], index: 2, kind: input, shape index: {}]
  %s3 = inlined_call_operand.vmem [shape: f32[64,128], index: 3, kind: output, shape index: {}]
  %s4 = sld [smem:[#allocation0]]
  $region22: #{dmon_forward.10} parent=0
    _
  %s6 = ssub.s32 1, %s4
  %s7 = scalar_select 0, %s6, %s4
  // Predicated region
  $region2: #{dmon_forward.10} parent=0 // pred_check
    _
  $region3: #{dmon_forward.10} parent=0 // pred_check_branch
    %9 = sbr.rel (0) target = $region5
  $region4: #{dmon_forward.10} parent=0 // pred_region
    _
  $region5: #{dmon_forward.10} parent=0 // pred_fallthru
    _
  // Predicated region
  $region6: #{dmon_forward.10} parent=0 // pred_check
    _
  $region7: #{dmon_forward.10} parent=0 // pred_check_branch
    %11 = sbr.rel (0) target = $region9
  $region8: #{dmon_forward.10} parent=0 // pred_region
    _
  $region9: #{dmon_forward.10} parent=0 // pred_fallthru
    _
  // Predicated region
  $region10: #{dmon_forward.10} parent=0 // pred_check
    _
  $region11: #{dmon_forward.10} parent=0 // pred_check_branch
    %13 = sbr.rel (0) target = $region13
  $region12: #{dmon_forward.10} parent=0 // pred_region
    _
  $region13: #{dmon_forward.10} parent=0 // pred_fallthru
    _
  %v14 = vld [vmem:[%s0] sm:$0xff]
  %v15 = vld [vmem:[%s0 + $0x8] sm:$0xff]
  %v16 = vld [vmem:[%s0 + $0x10] sm:$0xff]
  %v17 = vld [vmem:[%s0 + $0x18] sm:$0xff]
  %v18 = vld [vmem:[%s0 + $0x20] sm:$0xff]
  %v19 = vld [vmem:[%s0 + $0x28] sm:$0xff]
  %v20 = vld [vmem:[%s0 + $0x30] sm:$0xff]
  %v21 = vld [vmem:[%s0 + $0x38] sm:$0xff]
  %v22 = vld [vmem:[%s1] sm:$0xff]
  %v23 = vld [vmem:[%s1 + $0x8] sm:$0xff]
  %v24 = vld [vmem:[%s1 + $0x10] sm:$0xff]
  %v25 = vld [vmem:[%s1 + $0x18] sm:$0xff]
  %v26 = vld [vmem:[%s1 + $0x20] sm:$0xff]
  %v27 = vld [vmem:[%s1 + $0x28] sm:$0xff]
  %v28 = vld [vmem:[%s1 + $0x30] sm:$0xff]
  %v29 = vld [vmem:[%s1 + $0x38] sm:$0xff]
  %v30 = vld [vmem:[%s1 + $0x40] sm:$0xff]
  %v31 = vld [vmem:[%s1 + $0x48] sm:$0xff]
  %v32 = vld [vmem:[%s1 + $0x50] sm:$0xff]
  %v33 = vld [vmem:[%s1 + $0x58] sm:$0xff]
  %v34 = vld [vmem:[%s1 + $0x60] sm:$0xff]
  %v35 = vld [vmem:[%s1 + $0x68] sm:$0xff]
  %v36 = vld [vmem:[%s1 + $0x70] sm:$0xff]
  %v37 = vld [vmem:[%s1 + $0x78] sm:$0xff]
  %v38 = vld [vmem:[%s2] sm:$0x1]
  %v40 = vlaneseq
  %v41 = vshrl.u32 %v40, 7
  %v42 = vsub.s32 0, %v41
  %v43 = vrot.slane %v38, %v42
  %45 = vmatprep.subr.mxu0 0.0
  %46 = vmatpush1.msra.mxu0 %v22
  %47 = vmatprep.subr.mxu0 0.0
  %48 = vmatpush1.msra.mxu0 %v23
  %49 = vmatprep.subr.mxu0 0.0
  %50 = vmatpush1.msra.mxu0 %v24
  %51 = vmatprep.subr.mxu0 0.0
  %52 = vmatpush1.msra.mxu0 %v25
  %53 = vmatprep.subr.mxu0 0.0
  %54 = vmatpush1.msra.mxu0 %v26
  %55 = vmatprep.subr.mxu0 0.0
  %56 = vmatpush1.msra.mxu0 %v27
  %57 = vmatprep.subr.mxu0 0.0
  %58 = vmatpush1.msra.mxu0 %v28
  %59 = vmatprep.subr.mxu0 0.0
  %60 = vmatpush1.msra.mxu0 %v29
  %61 = vmatprep.subr.mxu0 0.0
  %62 = vmatpush1.msra.mxu0 %v30
  %63 = vmatprep.subr.mxu0 0.0
  %64 = vmatpush1.msra.mxu0 %v31
  %65 = vmatprep.subr.mxu0 0.0
  %66 = vmatpush1.msra.mxu0 %v32
  %67 = vmatprep.subr.mxu0 0.0
  %68 = vmatpush1.msra.mxu0 %v33
  %69 = vmatprep.subr.mxu0 0.0
  %70 = vmatpush1.msra.mxu0 %v34
  %71 = vmatprep.subr.mxu0 0.0
  %72 = vmatpush1.msra.mxu0 %v35
  %73 = vmatprep.subr.mxu0 0.0
  %74 = vmatpush1.msra.mxu0 %v36
  %75 = vmatprep.subr.mxu0 0.0
  %76 = vmatpush1.msra.mxu0 %v37
  %77 = vmatprep.subr.mxu0 0.0
  %78 = vmatpush1.msra.mxu0 0.0
  %79 = vmatprep.subr.mxu0 0.0
  %80 = vmatpush1.msra.mxu0 0.0
  %81 = vmatprep.subr.mxu0 0.0
  %82 = vmatpush1.msra.mxu0 0.0
  %83 = vmatprep.subr.mxu0 0.0
  %84 = vmatpush1.msra.mxu0 0.0
  %85 = vmatprep.subr.mxu0 0.0
  %86 = vmatpush1.msra.mxu0 0.0
  %87 = vmatprep.subr.mxu0 0.0
  %88 = vmatpush1.msra.mxu0 0.0
  %89 = vmatprep.subr.mxu0 0.0
  %90 = vmatpush1.msra.mxu0 0.0
  %91 = vmatprep.subr.mxu0 0.0
  %92 = vmatpush1.msra.mxu0 0.0
  %93 = vmatprep.subr.mxu0 0.0
  %94 = vmatpush1.msra.mxu0 0.0
  %95 = vmatprep.subr.mxu0 0.0
  %96 = vmatpush1.msra.mxu0 0.0
  %97 = vmatprep.subr.mxu0 0.0
  %98 = vmatpush1.msra.mxu0 0.0
  %99 = vmatprep.subr.mxu0 0.0
  %100 = vmatpush1.msra.mxu0 0.0
  %101 = vmatprep.subr.mxu0 0.0
  %102 = vmatpush1.msra.mxu0 0.0
  %103 = vmatprep.subr.mxu0 0.0
  %104 = vmatpush1.msra.mxu0 0.0
  %105 = vmatprep.subr.mxu0 0.0
  %106 = vmatpush1.msra.mxu0 0.0
  %107 = vmatprep.subr.mxu0 0.0
  %108 = vmatpush1.msra.mxu0 0.0
  %109 = vmatprep.mubr.f32.mxu0 0.0
  %110 = vmatmul.mubr.f32.gmra.mrb[0].mxu0 %v14
  %v111 = vpop.f32.mrb[0].mxu0
  %v112 = vadd.f32 %v43, %v111
  %v113 = vpop.f32.mrb[0].mxu0
  %114 = vmatprep.mubr.f32.mxu0 0.0
  %115 = vmatmul.mubr.f32.gmra.mrb[0].mxu0 %v15
  %v116 = vpop.f32.mrb[0].mxu0
  %v117 = vadd.f32 %v43, %v116
  %v118 = vpop.f32.mrb[0].mxu0
  %119 = vmatprep.mubr.f32.mxu0 0.0
  %120 = vmatmul.mubr.f32.gmra.mrb[0].mxu0 %v16
  %v121 = vpop.f32.mrb[0].mxu0
  %v122 = vadd.f32 %v43, %v121
  %v123 = vpop.f32.mrb[0].mxu0
  %124 = vmatprep.mubr.f32.mxu0 0.0
  %125 = vmatmul.mubr.f32.gmra.mrb[0].mxu0 %v17
  %v126 = vpop.f32.mrb[0].mxu0
  %v127 = vadd.f32 %v43, %v126
  %v128 = vpop.f32.mrb[0].mxu0
  %129 = vmatprep.mubr.f32.mxu0 0.0
  %130 = vmatmul.mubr.f32.gmra.mrb[0].mxu0 %v18
  %v131 = vpop.f32.mrb[0].mxu0
  %v132 = vadd.f32 %v43, %v131
  %v133 = vpop.f32.mrb[0].mxu0
  %134 = vmatprep.mubr.f32.mxu0 0.0
  %135 = vmatmul.mubr.f32.gmra.mrb[0].mxu0 %v19
  %v136 = vpop.f32.mrb[0].mxu0
  %v137 = vadd.f32 %v43, %v136
  %v138 = vpop.f32.mrb[0].mxu0
  %139 = vmatprep.mubr.f32.mxu0 0.0
  %140 = vmatmul.mubr.f32.gmra.mrb[0].mxu0 %v20
  %v141 = vpop.f32.mrb[0].mxu0
  %v142 = vadd.f32 %v43, %v141
  %v143 = vpop.f32.mrb[0].mxu0
  %144 = vmatprep.mubr.f32.mxu0 0.0
  %145 = vmatmul.mubr.f32.gmra.mrb[0].mxu0 %v21
  %v146 = vpop.f32.mrb[0].mxu0
  %v147 = vadd.f32 %v43, %v146
  %v148 = vpop.f32.mrb[0].mxu0
  %149 = vdwg.mxu0
  %150 = vmax.xlane.f32.xlu0 %v112
  %v151 = vpop.xlane.xlu0 %150
  %152 = vmax.xlane.f32.xlu0 %v117
  %v153 = vpop.xlane.xlu0 %152
  %154 = vmax.xlane.f32.xlu0 %v122
  %v155 = vpop.xlane.xlu0 %154
  %156 = vmax.xlane.f32.xlu0 %v127
  %v157 = vpop.xlane.xlu0 %156
  %158 = vmax.xlane.f32.xlu0 %v132
  %v159 = vpop.xlane.xlu0 %158
  %160 = vmax.xlane.f32.xlu0 %v137
  %v161 = vpop.xlane.xlu0 %160
  %162 = vmax.xlane.f32.xlu0 %v142
  %v163 = vpop.xlane.xlu0 %162
  %164 = vmax.xlane.f32.xlu0 %v147
  %v165 = vpop.xlane.xlu0 %164
  %v166 = vsub.f32 %v112, %v151
  %v167 = vsub.f32 %v117, %v153
  %v168 = vsub.f32 %v122, %v155
  %v169 = vsub.f32 %v127, %v157
  %v170 = vsub.f32 %v132, %v159
  %v171 = vsub.f32 %v137, %v161
  %v172 = vsub.f32 %v142, %v163
  %v173 = vsub.f32 %v147, %v165
  %v174 = vmul.f32 %v166, 1.442695
  %v175 = vpow.pop %v174
  %v176 = vmul.f32 %v167, 1.442695
  %v177 = vpow.pop %v176
  %v178 = vmul.f32 %v168, 1.442695
  %v179 = vpow.pop %v178
  %v180 = vmul.f32 %v169, 1.442695
  %v181 = vpow.pop %v180
  %v182 = vmul.f32 %v170, 1.442695
  %v183 = vpow.pop %v182
  %v184 = vmul.f32 %v171, 1.442695
  %v185 = vpow.pop %v184
  %v186 = vmul.f32 %v172, 1.442695
  %v187 = vpow.pop %v186
  %v188 = vmul.f32 %v173, 1.442695
  %v189 = vpow.pop %v188
  %190 = vadd.xlane.f32.xlu0 %v175
  %v191 = vpop.xlane.xlu0 %190
  %192 = vadd.xlane.f32.xlu0 %v177
  %v193 = vpop.xlane.xlu0 %192
  %194 = vadd.xlane.f32.xlu0 %v179
  %v195 = vpop.xlane.xlu0 %194
  %196 = vadd.xlane.f32.xlu0 %v181
  %v197 = vpop.xlane.xlu0 %196
  %198 = vadd.xlane.f32.xlu0 %v183
  %v199 = vpop.xlane.xlu0 %198
  %200 = vadd.xlane.f32.xlu0 %v185
  %v201 = vpop.xlane.xlu0 %200
  %202 = vadd.xlane.f32.xlu0 %v187
  %v203 = vpop.xlane.xlu0 %202
  %204 = vadd.xlane.f32.xlu0 %v189
  %v205 = vpop.xlane.xlu0 %204
  %v206 = vrcp.pop %v191
  %v207 = vrcp.pop %v193
  %v208 = vrcp.pop %v195
  %v209 = vrcp.pop %v197
  %v210 = vrcp.pop %v199
  %v211 = vrcp.pop %v201
  %v212 = vrcp.pop %v203
  %v213 = vrcp.pop %v205
  %v214 = vmul.f32 %v175, %v206
  %v215 = vmul.f32 %v177, %v207
  %v216 = vmul.f32 %v179, %v208
  %v217 = vmul.f32 %v181, %v209
  %v218 = vmul.f32 %v183, %v210
  %v219 = vmul.f32 %v185, %v211
  %v220 = vmul.f32 %v187, %v212
  %v221 = vmul.f32 %v189, %v213
  %222 = vst [vmem:[%s3] sm:$0xff] %v214
  %223 = vst [vmem:[%s3 + $0x8] sm:$0xff] %v215
  %224 = vst [vmem:[%s3 + $0x10] sm:$0xff] %v216
  %225 = vst [vmem:[%s3 + $0x18] sm:$0xff] %v217
  %226 = vst [vmem:[%s3 + $0x20] sm:$0xff] %v218
  %227 = vst [vmem:[%s3 + $0x28] sm:$0xff] %v219
  %228 = vst [vmem:[%s3 + $0x30] sm:$0xff] %v220
  %229 = vst [vmem:[%s3 + $0x38] sm:$0xff] %v221
  // Predicated region
  $region14: #{dmon_forward.10} parent=0 // pred_check
    _
  $region15: #{dmon_forward.10} parent=0 // pred_check_branch
    %231 = sbr.rel (0) target = $region17
  $region16: #{dmon_forward.10} parent=0 // pred_region
    _
  $region17: #{dmon_forward.10} parent=0 // pred_fallthru
    _
  // Predicated region
  $region18: #{dmon_forward.10} parent=0 // pred_check
    _
  $region19: #{dmon_forward.10} parent=0 // pred_check_branch
    %233 = sbr.rel (0) target = $region21
  $region20: #{dmon_forward.10} parent=0 // pred_region
    _
  $region21: #{dmon_forward.10} parent=0 // pred_fallthru
    _

// kernel: dmon_forward.6
$region0: #{dmon_forward.6}
  #allocation0 [shape = 'u32[]', space=smem, size = 0x4, offset = 0x4, fixed_abs, tag = 'smem constant byte address 0x4 - core index']
  #allocation1 [shape = 'u32[144,128]{1,0:T(1,128)}', space=vmem, size = 0x12000, scoped, tag = 'internal scratch']
  %s0 = inlined_call_operand.vmem [shape: f32[64,128], index: 0, kind: input, shape index: {}]
  %s1 = inlined_call_operand.vmem [shape: f32[128,128], index: 1, kind: input, shape index: {}]
  %s2 = inlined_call_operand.vmem [shape: f32[64,1], index: 2, kind: input, shape index: {}]
  %s3 = inlined_call_operand.vmem [shape: bf16[64,128], index: 3, kind: output, shape index: {}]
  %s4 = sld [smem:[#allocation0]]
  $region22: #{dmon_forward.6} parent=0
    _
  %s6 = ssub.s32 1, %s4
  %s7 = scalar_select 0, %s6, %s4
  // Predicated region
  $region2: #{dmon_forward.6} parent=0 // pred_check
    _
  $region3: #{dmon_forward.6} parent=0 // pred_check_branch
    %9 = sbr.rel (0) target = $region5
  $region4: #{dmon_forward.6} parent=0 // pred_region
    _
  $region5: #{dmon_forward.6} parent=0 // pred_fallthru
    _
  // Predicated region
  $region6: #{dmon_forward.6} parent=0 // pred_check
    _
  $region7: #{dmon_forward.6} parent=0 // pred_check_branch
    %11 = sbr.rel (0) target = $region9
  $region8: #{dmon_forward.6} parent=0 // pred_region
    _
  $region9: #{dmon_forward.6} parent=0 // pred_fallthru
    _
  // Predicated region
  $region10: #{dmon_forward.6} parent=0 // pred_check
    _
  $region11: #{dmon_forward.6} parent=0 // pred_check_branch
    %13 = sbr.rel (0) target = $region13
  $region12: #{dmon_forward.6} parent=0 // pred_region
    _
  $region13: #{dmon_forward.6} parent=0 // pred_fallthru
    _
  %v14 = vld [vmem:[%s0] sm:$0xff]
  %v15 = vld [vmem:[%s0 + $0x8] sm:$0xff]
  %v16 = vld [vmem:[%s0 + $0x10] sm:$0xff]
  %v17 = vld [vmem:[%s0 + $0x18] sm:$0xff]
  %v18 = vld [vmem:[%s0 + $0x20] sm:$0xff]
  %v19 = vld [vmem:[%s0 + $0x28] sm:$0xff]
  %v20 = vld [vmem:[%s0 + $0x30] sm:$0xff]
  %v21 = vld [vmem:[%s0 + $0x38] sm:$0xff]
  %v22 = vld [vmem:[%s1] sm:$0xff]
  %v23 = vld [vmem:[%s1 + $0x8] sm:$0xff]
  %v24 = vld [vmem:[%s1 + $0x10] sm:$0xff]
  %v25 = vld [vmem:[%s1 + $0x18] sm:$0xff]
  %v26 = vld [vmem:[%s1 + $0x20] sm:$0xff]
  %v27 = vld [vmem:[%s1 + $0x28] sm:$0xff]
  %v28 = vld [vmem:[%s1 + $0x30] sm:$0xff]
  %v29 = vld [vmem:[%s1 + $0x38] sm:$0xff]
  %v30 = vld [vmem:[%s1 + $0x40] sm:$0xff]
  %v31 = vld [vmem:[%s1 + $0x48] sm:$0xff]
  %v32 = vld [vmem:[%s1 + $0x50] sm:$0xff]
  %v33 = vld [vmem:[%s1 + $0x58] sm:$0xff]
  %v34 = vld [vmem:[%s1 + $0x60] sm:$0xff]
  %v35 = vld [vmem:[%s1 + $0x68] sm:$0xff]
  %v36 = vld [vmem:[%s1 + $0x70] sm:$0xff]
  %v37 = vld [vmem:[%s1 + $0x78] sm:$0xff]
  %38 = vmatprep.subr.mxu0 0.0
  %39 = vmatpush1.msra.mxu0 %v22
  %40 = vmatprep.subr.mxu0 0.0
  %41 = vmatpush1.msra.mxu0 %v23
  %42 = vmatprep.subr.mxu0 0.0
  %43 = vmatpush1.msra.mxu0 %v24
  %44 = vmatprep.subr.mxu0 0.0
  %45 = vmatpush1.msra.mxu0 %v25
  %46 = vmatprep.subr.mxu0 0.0
  %47 = vmatpush1.msra.mxu0 %v26
  %48 = vmatprep.subr.mxu0 0.0
  %49 = vmatpush1.msra.mxu0 %v27
  %50 = vmatprep.subr.mxu0 0.0
  %51 = vmatpush1.msra.mxu0 %v28
  %52 = vmatprep.subr.mxu0 0.0
  %53 = vmatpush1.msra.mxu0 %v29
  %54 = vmatprep.subr.mxu0 0.0
  %55 = vmatpush1.msra.mxu0 %v30
  %56 = vmatprep.subr.mxu0 0.0
  %57 = vmatpush1.msra.mxu0 %v31
  %58 = vmatprep.subr.mxu0 0.0
  %59 = vmatpush1.msra.mxu0 %v32
  %60 = vmatprep.subr.mxu0 0.0
  %61 = vmatpush1.msra.mxu0 %v33
  %62 = vmatprep.subr.mxu0 0.0
  %63 = vmatpush1.msra.mxu0 %v34
  %64 = vmatprep.subr.mxu0 0.0
  %65 = vmatpush1.msra.mxu0 %v35
  %66 = vmatprep.subr.mxu0 0.0
  %67 = vmatpush1.msra.mxu0 %v36
  %68 = vmatprep.subr.mxu0 0.0
  %69 = vmatpush1.msra.mxu0 %v37
  %70 = vmatprep.subr.mxu0 0.0
  %71 = vmatpush1.msra.mxu0 0.0
  %72 = vmatprep.subr.mxu0 0.0
  %73 = vmatpush1.msra.mxu0 0.0
  %74 = vmatprep.subr.mxu0 0.0
  %75 = vmatpush1.msra.mxu0 0.0
  %76 = vmatprep.subr.mxu0 0.0
  %77 = vmatpush1.msra.mxu0 0.0
  %78 = vmatprep.subr.mxu0 0.0
  %79 = vmatpush1.msra.mxu0 0.0
  %80 = vmatprep.subr.mxu0 0.0
  %81 = vmatpush1.msra.mxu0 0.0
  %82 = vmatprep.subr.mxu0 0.0
  %83 = vmatpush1.msra.mxu0 0.0
  %84 = vmatprep.subr.mxu0 0.0
  %85 = vmatpush1.msra.mxu0 0.0
  %86 = vmatprep.subr.mxu0 0.0
  %87 = vmatpush1.msra.mxu0 0.0
  %88 = vmatprep.subr.mxu0 0.0
  %89 = vmatpush1.msra.mxu0 0.0
  %90 = vmatprep.subr.mxu0 0.0
  %91 = vmatpush1.msra.mxu0 0.0
  %92 = vmatprep.subr.mxu0 0.0
  %93 = vmatpush1.msra.mxu0 0.0
  %94 = vmatprep.subr.mxu0 0.0
  %95 = vmatpush1.msra.mxu0 0.0
  %96 = vmatprep.subr.mxu0 0.0
  %97 = vmatpush1.msra.mxu0 0.0
  %98 = vmatprep.subr.mxu0 0.0
  %99 = vmatpush1.msra.mxu0 0.0
  %100 = vmatprep.subr.mxu0 0.0
  %101 = vmatpush1.msra.mxu0 0.0
  %102 = vmatprep.mubr.f32.mxu0 0.0
  %103 = vmatmul.mubr.f32.gmra.mrb[0].mxu0 %v14
  %v104 = vpop.f32.mrb[0].mxu0
  %v105 = vadd.f32 0.0, %v104
  %v106 = vpop.f32.mrb[0].mxu0
  %107 = vmatprep.mubr.f32.mxu0 0.0
  %108 = vmatmul.mubr.f32.gmra.mrb[0].mxu0 %v15
  %v109 = vpop.f32.mrb[0].mxu0
  %v110 = vadd.f32 0.0, %v109
  %v111 = vpop.f32.mrb[0].mxu0
  %112 = vmatprep.mubr.f32.mxu0 0.0
  %113 = vmatmul.mubr.f32.gmra.mrb[0].mxu0 %v16
  %v114 = vpop.f32.mrb[0].mxu0
  %v115 = vadd.f32 0.0, %v114
  %v116 = vpop.f32.mrb[0].mxu0
  %117 = vmatprep.mubr.f32.mxu0 0.0
  %118 = vmatmul.mubr.f32.gmra.mrb[0].mxu0 %v17
  %v119 = vpop.f32.mrb[0].mxu0
  %v120 = vadd.f32 0.0, %v119
  %v121 = vpop.f32.mrb[0].mxu0
  %122 = vmatprep.mubr.f32.mxu0 0.0
  %123 = vmatmul.mubr.f32.gmra.mrb[0].mxu0 %v18
  %v124 = vpop.f32.mrb[0].mxu0
  %v125 = vadd.f32 0.0, %v124
  %v126 = vpop.f32.mrb[0].mxu0
  %127 = vmatprep.mubr.f32.mxu0 0.0
  %128 = vmatmul.mubr.f32.gmra.mrb[0].mxu0 %v19
  %v129 = vpop.f32.mrb[0].mxu0
  %v130 = vadd.f32 0.0, %v129
  %v131 = vpop.f32.mrb[0].mxu0
  %132 = vmatprep.mubr.f32.mxu0 0.0
  %133 = vmatmul.mubr.f32.gmra.mrb[0].mxu0 %v20
  %v134 = vpop.f32.mrb[0].mxu0
  %v135 = vadd.f32 0.0, %v134
  %v136 = vpop.f32.mrb[0].mxu0
  %137 = vmatprep.mubr.f32.mxu0 0.0
  %138 = vmatmul.mubr.f32.gmra.mrb[0].mxu0 %v21
  %v139 = vpop.f32.mrb[0].mxu0
  %v140 = vadd.f32 0.0, %v139
  %v141 = vpop.f32.mrb[0].mxu0
  %142 = vdwg.mxu0
  %v143 = vld [vmem:[%s2] sm:$0xff]
  %v144 = vld [vmem:[%s2 + $0x8] sm:$0xff]
  %v145 = vld [vmem:[%s2 + $0x10] sm:$0xff]
  %v146 = vld [vmem:[%s2 + $0x18] sm:$0xff]
  %v147 = vld [vmem:[%s2 + $0x20] sm:$0xff]
  %v148 = vld [vmem:[%s2 + $0x28] sm:$0xff]
  %v149 = vld [vmem:[%s2 + $0x30] sm:$0xff]
  %v150 = vld [vmem:[%s2 + $0x38] sm:$0xff]
  %152 = vset.pattern.permute.xlu0 0
  %153 = vperm.xlu0 %152, %v143
  %v154 = vpop.permute.xlu0 %153
  %157 = vset.pattern.permute.xlu0 0
  %158 = vperm.xlu0 %157, %v144
  %v159 = vpop.permute.xlu0 %158
  %162 = vset.pattern.permute.xlu0 0
  %163 = vperm.xlu0 %162, %v145
  %v164 = vpop.permute.xlu0 %163
  %167 = vset.pattern.permute.xlu0 0
  %168 = vperm.xlu0 %167, %v146
  %v169 = vpop.permute.xlu0 %168
  %172 = vset.pattern.permute.xlu0 0
  %173 = vperm.xlu0 %172, %v147
  %v174 = vpop.permute.xlu0 %173
  %177 = vset.pattern.permute.xlu0 0
  %178 = vperm.xlu0 %177, %v148
  %v179 = vpop.permute.xlu0 %178
  %182 = vset.pattern.permute.xlu0 0
  %183 = vperm.xlu0 %182, %v149
  %v184 = vpop.permute.xlu0 %183
  %187 = vset.pattern.permute.xlu0 0
  %188 = vperm.xlu0 %187, %v150
  %v189 = vpop.permute.xlu0 %188
  %v191 = vmul.f32 %v105, %v154
  %v192 = vmul.f32 %v110, %v159
  %v193 = vmul.f32 %v115, %v164
  %v194 = vmul.f32 %v120, %v169
  %v195 = vmul.f32 %v125, %v174
  %v196 = vmul.f32 %v130, %v179
  %v197 = vmul.f32 %v135, %v184
  %v198 = vmul.f32 %v140, %v189
  %v199 = vpack.c.bf16 %v192, %v191
  %v200 = vpack.c.bf16 %v194, %v193
  %v201 = vpack.c.bf16 %v196, %v195
  %v202 = vpack.c.bf16 %v198, %v197
  %v207 = vunpack.c.l.b16 %v199
  %v208 = vunpack.c.h.b16 %v199
  %v209 = vunpack.c.l.b16 %v200
  %v210 = vunpack.c.h.b16 %v200
  %v211 = vunpack.c.l.b16 %v201
  %v212 = vunpack.c.h.b16 %v201
  %v213 = vunpack.c.l.b16 %v202
  %v214 = vunpack.c.h.b16 %v202
  %v215 = vpack.c.b16 %v207, %v207
  %v216 = vpack.c.b16 %v208, %v208
  %v217 = vpack.c.b16 %v209, %v209
  %v218 = vpack.c.b16 %v210, %v210
  %v219 = vpack.c.b16 %v211, %v211
  %v220 = vpack.c.b16 %v212, %v212
  %v221 = vpack.c.b16 %v213, %v213
  %v222 = vpack.c.b16 %v214, %v214
  %231 = vst [vmem:[%s3] sm:$0xf] %v215
  %232 = vst [vmem:[%s3 + $0x4] sm:$0xf] %v216
  %233 = vst [vmem:[%s3 + $0x8] sm:$0xf] %v217
  %234 = vst [vmem:[%s3 + $0xc] sm:$0xf] %v218
  %235 = vst [vmem:[%s3 + $0x10] sm:$0xf] %v219
  %236 = vst [vmem:[%s3 + $0x14] sm:$0xf] %v220
  %237 = vst [vmem:[%s3 + $0x18] sm:$0xf] %v221
  %238 = vst [vmem:[%s3 + $0x1c] sm:$0xf] %v222
  // Predicated region
  $region14: #{dmon_forward.6} parent=0 // pred_check
    _
  $region15: #{dmon_forward.6} parent=0 // pred_check_branch
    %240 = sbr.rel (0) target = $region17
  $region16: #{dmon_forward.6} parent=0 // pred_region
    _
  $region17: #{dmon_forward.6} parent=0 // pred_fallthru
    _
  // Predicated region
  $region18: #{dmon_forward.6} parent=0 // pred_check
    _
  $region19: #{dmon_forward.6} parent=0 // pred_check_branch
    %242 = sbr.rel (0) target = $region21
  $region20: #{dmon_forward.6} parent=0 // pred_region
    _
  $region21: #{dmon_forward.6} parent=0 // pred_fallthru
    _

// kernel: dmon_forward.7
$region0: #{dmon_forward.7}
  #allocation0 [shape = 'u32[]', space=smem, size = 0x4, offset = 0x4, fixed_abs, tag = 'smem constant byte address 0x4 - core index']
  #allocation1 [shape = 'u32[144,128]{1,0:T(1,128)}', space=vmem, size = 0x12000, scoped, tag = 'internal scratch']
  #allocation2 [shape = 'f32[64,128]{1,0:T(8,128)}', space=vmem, size = 0x8000, scoped, tag = 'scratch operand']
  %s0 = inlined_call_operand.vmem [shape: bf16[64,64], index: 0, kind: input, shape index: {}]
  %s1 = inlined_call_operand.vmem [shape: bf16[64,128], index: 1, kind: input, shape index: {}]
  %s2 = inlined_call_operand.vmem [shape: f32[64,1], index: 2, kind: input, shape index: {}]
  %s3 = inlined_call_operand.vmem [shape: f32[1,128], index: 3, kind: input, shape index: {}]
  %s4 = inlined_call_operand.vmem [shape: f32[64,128], index: 4, kind: output, shape index: {}]
  %s5 = sld [smem:[#allocation0]]
  $region34: #{dmon_forward.7} parent=0
    _
  %s7 = ssub.s32 1, %s5
  %s8 = scalar_select 0, %s7, %s5
  // Predicated region
  $region2: #{dmon_forward.7} parent=0 // pred_check
    _
  $region3: #{dmon_forward.7} parent=0 // pred_check_branch
    %10 = sbr.rel (0) target = $region5
  $region4: #{dmon_forward.7} parent=0 // pred_region
    _
  $region5: #{dmon_forward.7} parent=0 // pred_fallthru
    _
  // Predicated region
  $region6: #{dmon_forward.7} parent=0 // pred_check
    _
  $region7: #{dmon_forward.7} parent=0 // pred_check_branch
    %12 = sbr.rel (0) target = $region9
  $region8: #{dmon_forward.7} parent=0 // pred_region
    _
  $region9: #{dmon_forward.7} parent=0 // pred_fallthru
    _
  // Predicated region
  $region10: #{dmon_forward.7} parent=0 // pred_check
    _
  $region11: #{dmon_forward.7} parent=0 // pred_check_branch
    %14 = sbr.rel (0) target = $region13
  $region12: #{dmon_forward.7} parent=0 // pred_region
    _
  $region13: #{dmon_forward.7} parent=0 // pred_fallthru
    _
  // Predicated region
  $region14: #{dmon_forward.7} parent=0 // pred_check
    _
  $region15: #{dmon_forward.7} parent=0 // pred_check_branch
    %16 = sbr.rel (0) target = $region17
  $region16: #{dmon_forward.7} parent=0 // pred_region
    _
  $region17: #{dmon_forward.7} parent=0 // pred_fallthru
    _
  %p18 = scmp.eq.s32.totalorder 0, 0
  // Predicated region
  $region18: #{dmon_forward.7} parent=0 // pred_check
    %p19 = pneg %p18
  $region19: #{dmon_forward.7} parent=0 // pred_check_branch
    %21 = sbr.rel (%p19) target = $region21
  $region20: #{dmon_forward.7} parent=0 // pred_region
    %22 = vst [vmem:[#allocation2] sm:$0xff] 0.0
    %23 = vst [vmem:[#allocation2 + $0x8] sm:$0xff] 0.0
    %24 = vst [vmem:[#allocation2 + $0x10] sm:$0xff] 0.0
    %25 = vst [vmem:[#allocation2 + $0x18] sm:$0xff] 0.0
    %26 = vst [vmem:[#allocation2 + $0x20] sm:$0xff] 0.0
    %27 = vst [vmem:[#allocation2 + $0x28] sm:$0xff] 0.0
    %28 = vst [vmem:[#allocation2 + $0x30] sm:$0xff] 0.0
    %29 = vst [vmem:[#allocation2 + $0x38] sm:$0xff] 0.0
  $region21: #{dmon_forward.7} parent=0 // pred_fallthru
    _
  %v30 = vld [vmem:[#allocation2] sm:$0xff]
  %v31 = vld [vmem:[#allocation2 + $0x8] sm:$0xff]
  %v32 = vld [vmem:[#allocation2 + $0x10] sm:$0xff]
  %v33 = vld [vmem:[#allocation2 + $0x18] sm:$0xff]
  %v34 = vld [vmem:[#allocation2 + $0x20] sm:$0xff]
  %v35 = vld [vmem:[#allocation2 + $0x28] sm:$0xff]
  %v36 = vld [vmem:[#allocation2 + $0x30] sm:$0xff]
  %v37 = vld [vmem:[#allocation2 + $0x38] sm:$0xff]
  %v38 = vld [vmem:[%s0] sm:$0xf]
  %v39 = vld [vmem:[%s0 + $0x4] sm:$0xf]
  %v40 = vld [vmem:[%s0 + $0x8] sm:$0xf]
  %v41 = vld [vmem:[%s0 + $0xc] sm:$0xf]
  %v42 = vld [vmem:[%s0 + $0x10] sm:$0xf]
  %v43 = vld [vmem:[%s0 + $0x14] sm:$0xf]
  %v44 = vld [vmem:[%s0 + $0x18] sm:$0xf]
  %v45 = vld [vmem:[%s0 + $0x1c] sm:$0xf]
  %v46 = vld [vmem:[%s1] sm:$0xf]
  %v47 = vld [vmem:[%s1 + $0x4] sm:$0xf]
  %v48 = vld [vmem:[%s1 + $0x8] sm:$0xf]
  %v49 = vld [vmem:[%s1 + $0xc] sm:$0xf]
  %v50 = vld [vmem:[%s1 + $0x10] sm:$0xf]
  %v51 = vld [vmem:[%s1 + $0x14] sm:$0xf]
  %v52 = vld [vmem:[%s1 + $0x18] sm:$0xf]
  %v53 = vld [vmem:[%s1 + $0x1c] sm:$0xf]
  %v62 = vunpack.c.l.b16 %v38
  %v63 = vunpack.c.l.b16 %v39
  %v64 = vunpack.c.l.b16 %v40
  %v65 = vunpack.c.l.b16 %v41
  %v66 = vunpack.c.l.b16 %v42
  %v67 = vunpack.c.l.b16 %v43
  %v68 = vunpack.c.l.b16 %v44
  %v69 = vunpack.c.l.b16 %v45
  %v70 = vpack.c.b16 %v63, %v62
  %v71 = vpack.c.b16 %v65, %v64
  %v72 = vpack.c.b16 %v67, %v66
  %v73 = vpack.c.b16 %v69, %v68
  %v82 = vunpack.c.l.b16 %v46
  %v83 = vunpack.c.l.b16 %v47
  %v84 = vunpack.c.l.b16 %v48
  %v85 = vunpack.c.l.b16 %v49
  %v86 = vunpack.c.l.b16 %v50
  %v87 = vunpack.c.l.b16 %v51
  %v88 = vunpack.c.l.b16 %v52
  %v89 = vunpack.c.l.b16 %v53
  %v90 = vpack.c.b16 %v83, %v82
  %v91 = vpack.c.b16 %v85, %v84
  %v92 = vpack.c.b16 %v87, %v86
  %v93 = vpack.c.b16 %v89, %v88
  %vm98 = vcmask 523264
  %v100 = vsel %vm98, %v70, 0
  %v103 = vsel %vm98, %v71, 0
  %v106 = vsel %vm98, %v72, 0
  %v109 = vsel %vm98, %v73, 0
  %111 = vmatprep.subr.bf16.mxu0 0
  %112 = vmatpush1.bf16.msra.mxu0 %v90
  %113 = vmatprep.subr.bf16.mxu0 0
  %114 = vmatpush1.bf16.msra.mxu0 %v91
  %115 = vmatprep.subr.bf16.mxu0 0
  %116 = vmatpush1.bf16.msra.mxu0 %v92
  %117 = vmatprep.subr.bf16.mxu0 0
  %118 = vmatpush1.bf16.msra.mxu0 %v93
  %119 = vmatprep.subr.bf16.mxu0 0
  %120 = vmatpush1.bf16.msra.mxu0 0
  %121 = vmatprep.subr.bf16.mxu0 0
  %122 = vmatpush1.bf16.msra.mxu0 0
  %123 = vmatprep.subr.bf16.mxu0 0
  %124 = vmatpush1.bf16.msra.mxu0 0
  %125 = vmatprep.subr.bf16.mxu0 0
  %126 = vmatpush1.bf16.msra.mxu0 0
  %127 = vmatprep.subr.bf16.mxu0 0
  %128 = vmatpush1.bf16.msra.mxu0 0
  %129 = vmatprep.subr.bf16.mxu0 0
  %130 = vmatpush1.bf16.msra.mxu0 0
  %131 = vmatprep.subr.bf16.mxu0 0
  %132 = vmatpush1.bf16.msra.mxu0 0
  %133 = vmatprep.subr.bf16.mxu0 0
  %134 = vmatpush1.bf16.msra.mxu0 0
  %135 = vmatprep.subr.bf16.mxu0 0
  %136 = vmatpush1.bf16.msra.mxu0 0
  %137 = vmatprep.subr.bf16.mxu0 0
  %138 = vmatpush1.bf16.msra.mxu0 0
  %139 = vmatprep.subr.bf16.mxu0 0
  %140 = vmatpush1.bf16.msra.mxu0 0
  %141 = vmatprep.subr.bf16.mxu0 0
  %142 = vmatpush1.bf16.msra.mxu0 0
  %143 = vmatprep.mubr.bf16.mxu0 0
  %144 = vmatmul.mubr.bf16.gmra.mrb[0].mxu0 %v100
  %v145 = vpop.f32.mrb[0].mxu0
  %v146 = vadd.f32 0.0, %v145
  %v147 = vpop.f32.mrb[0].mxu0
  %v148 = vpop.f32.mrb[0].mxu0
  %v149 = vadd.f32 0.0, %v148
  %v150 = vpop.f32.mrb[0].mxu0
  %151 = vmatprep.mubr.bf16.mxu0 0
  %152 = vmatmul.mubr.bf16.gmra.mrb[0].mxu0 %v103
  %v153 = vpop.f32.mrb[0].mxu0
  %v154 = vadd.f32 0.0, %v153
  %v155 = vpop.f32.mrb[0].mxu0
  %v156 = vpop.f32.mrb[0].mxu0
  %v157 = vadd.f32 0.0, %v156
  %v158 = vpop.f32.mrb[0].mxu0
  %159 = vmatprep.mubr.bf16.mxu0 0
  %160 = vmatmul.mubr.bf16.gmra.mrb[0].mxu0 %v106
  %v161 = vpop.f32.mrb[0].mxu0
  %v162 = vadd.f32 0.0, %v161
  %v163 = vpop.f32.mrb[0].mxu0
  %v164 = vpop.f32.mrb[0].mxu0
  %v165 = vadd.f32 0.0, %v164
  %v166 = vpop.f32.mrb[0].mxu0
  %167 = vmatprep.mubr.bf16.mxu0 0
  %168 = vmatmul.mubr.bf16.gmra.mrb[0].mxu0 %v109
  %v169 = vpop.f32.mrb[0].mxu0
  %v170 = vadd.f32 0.0, %v169
  %v171 = vpop.f32.mrb[0].mxu0
  %v172 = vpop.f32.mrb[0].mxu0
  %v173 = vadd.f32 0.0, %v172
  %v174 = vpop.f32.mrb[0].mxu0
  %175 = vdwg.mxu0
  %v176 = vadd.f32 %v30, %v146
  %v177 = vadd.f32 %v31, %v149
  %v178 = vadd.f32 %v32, %v154
  %v179 = vadd.f32 %v33, %v157
  %v180 = vadd.f32 %v34, %v162
  %v181 = vadd.f32 %v35, %v165
  %v182 = vadd.f32 %v36, %v170
  %v183 = vadd.f32 %v37, %v173
  %184 = vst [vmem:[#allocation2] sm:$0xff] %v176
  %185 = vst [vmem:[#allocation2 + $0x8] sm:$0xff] %v177
  %186 = vst [vmem:[#allocation2 + $0x10] sm:$0xff] %v178
  %187 = vst [vmem:[#allocation2 + $0x18] sm:$0xff] %v179
  %188 = vst [vmem:[#allocation2 + $0x20] sm:$0xff] %v180
  %189 = vst [vmem:[#allocation2 + $0x28] sm:$0xff] %v181
  %190 = vst [vmem:[#allocation2 + $0x30] sm:$0xff] %v182
  %191 = vst [vmem:[#allocation2 + $0x38] sm:$0xff] %v183
  // Predicated region
  $region22: #{dmon_forward.7} parent=0 // pred_check
    %p192 = pneg %p18
  $region23: #{dmon_forward.7} parent=0 // pred_check_branch
    %194 = sbr.rel (%p192) target = $region25
  $region24: #{dmon_forward.7} parent=0 // pred_region
    %v195 = vld [vmem:[%s2] sm:$0xff]
    %v196 = vld [vmem:[%s2 + $0x8] sm:$0xff]
    %v197 = vld [vmem:[%s2 + $0x10] sm:$0xff]
    %v198 = vld [vmem:[%s2 + $0x18] sm:$0xff]
    %v199 = vld [vmem:[%s2 + $0x20] sm:$0xff]
    %v200 = vld [vmem:[%s2 + $0x28] sm:$0xff]
    %v201 = vld [vmem:[%s2 + $0x30] sm:$0xff]
    %v202 = vld [vmem:[%s2 + $0x38] sm:$0xff]
    %v203 = vld [vmem:[#allocation2] sm:$0xff]
    %v204 = vld [vmem:[#allocation2 + $0x8] sm:$0xff]
    %v205 = vld [vmem:[#allocation2 + $0x10] sm:$0xff]
    %v206 = vld [vmem:[#allocation2 + $0x18] sm:$0xff]
    %v207 = vld [vmem:[#allocation2 + $0x20] sm:$0xff]
    %v208 = vld [vmem:[#allocation2 + $0x28] sm:$0xff]
    %v209 = vld [vmem:[#allocation2 + $0x30] sm:$0xff]
    %v210 = vld [vmem:[#allocation2 + $0x38] sm:$0xff]
    %212 = vset.pattern.permute.xlu0 0
    %213 = vperm.xlu0 %212, %v195
    %v214 = vpop.permute.xlu0 %213
    %217 = vset.pattern.permute.xlu0 0
    %218 = vperm.xlu0 %217, %v196
    %v219 = vpop.permute.xlu0 %218
    %222 = vset.pattern.permute.xlu0 0
    %223 = vperm.xlu0 %222, %v197
    %v224 = vpop.permute.xlu0 %223
    %227 = vset.pattern.permute.xlu0 0
    %228 = vperm.xlu0 %227, %v198
    %v229 = vpop.permute.xlu0 %228
    %232 = vset.pattern.permute.xlu0 0
    %233 = vperm.xlu0 %232, %v199
    %v234 = vpop.permute.xlu0 %233
    %237 = vset.pattern.permute.xlu0 0
    %238 = vperm.xlu0 %237, %v200
    %v239 = vpop.permute.xlu0 %238
    %242 = vset.pattern.permute.xlu0 0
    %243 = vperm.xlu0 %242, %v201
    %v244 = vpop.permute.xlu0 %243
    %247 = vset.pattern.permute.xlu0 0
    %248 = vperm.xlu0 %247, %v202
    %v249 = vpop.permute.xlu0 %248
    %v251 = vmul.f32 %v214, %v203
    %v252 = vmul.f32 %v219, %v204
    %v253 = vmul.f32 %v224, %v205
    %v254 = vmul.f32 %v229, %v206
    %v255 = vmul.f32 %v234, %v207
    %v256 = vmul.f32 %v239, %v208
    %v257 = vmul.f32 %v244, %v209
    %v258 = vmul.f32 %v249, %v210
    %v259 = vld [vmem:[%s3] sm:$0x1]
    %v261 = vlaneseq
    %v262 = vshrl.u32 %v261, 7
    %v263 = vsub.s32 0, %v262
    %v264 = vrot.slane %v259, %v263
    %v266 = vadd.f32 %v251, %v264
    %v267 = vadd.f32 %v252, %v264
    %v268 = vadd.f32 %v253, %v264
    %v269 = vadd.f32 %v254, %v264
    %v270 = vadd.f32 %v255, %v264
    %v271 = vadd.f32 %v256, %v264
    %v272 = vadd.f32 %v257, %v264
    %v273 = vadd.f32 %v258, %v264
    %v274 = vmax.f32 %v266, 0.0
    %v275 = vmax.f32 %v267, 0.0
    %v276 = vmax.f32 %v268, 0.0
    %v277 = vmax.f32 %v269, 0.0
    %v278 = vmax.f32 %v270, 0.0
    %v279 = vmax.f32 %v271, 0.0
    %v280 = vmax.f32 %v272, 0.0
    %v281 = vmax.f32 %v273, 0.0
    %282 = vst [vmem:[%s4] sm:$0xff] %v274
    %283 = vst [vmem:[%s4 + $0x8] sm:$0xff] %v275
    %284 = vst [vmem:[%s4 + $0x10] sm:$0xff] %v276
    %285 = vst [vmem:[%s4 + $0x18] sm:$0xff] %v277
    %286 = vst [vmem:[%s4 + $0x20] sm:$0xff] %v278
    %287 = vst [vmem:[%s4 + $0x28] sm:$0xff] %v279
    %288 = vst [vmem:[%s4 + $0x30] sm:$0xff] %v280
    %289 = vst [vmem:[%s4 + $0x38] sm:$0xff] %v281
  $region25: #{dmon_forward.7} parent=0 // pred_fallthru
    _
  // Predicated region
  $region26: #{dmon_forward.7} parent=0 // pred_check
    _
  $region27: #{dmon_forward.7} parent=0 // pred_check_branch
    %291 = sbr.rel (0) target = $region29
  $region28: #{dmon_forward.7} parent=0 // pred_region
    _
  $region29: #{dmon_forward.7} parent=0 // pred_fallthru
    _
  // Predicated region
  $region30: #{dmon_forward.7} parent=0 // pred_check
    _
  $region31: #{dmon_forward.7} parent=0 // pred_check_branch
    %293 = sbr.rel (0) target = $region33
  $region32: #{dmon_forward.7} parent=0 // pred_region
    _
  $region33: #{dmon_forward.7} parent=0 // pred_fallthru
    _

// kernel: dmon_forward.11
$region0: #{dmon_forward.11}
  #allocation0 [shape = 'u32[]', space=smem, size = 0x4, offset = 0x4, fixed_abs, tag = 'smem constant byte address 0x4 - core index']
  #allocation1 [shape = 'u32[144,128]{1,0:T(1,128)}', space=vmem, size = 0x12000, scoped, tag = 'internal scratch']
  #allocation2 [shape = 'f32[64,128]{1,0:T(8,128)}', space=vmem, size = 0x8000, scoped, tag = 'scratch operand']
  %s0 = inlined_call_operand.vmem [shape: bf16[64,64], index: 0, kind: input, shape index: {}]
  %s1 = inlined_call_operand.vmem [shape: bf16[64,128], index: 1, kind: input, shape index: {}, may-alias: {1,2}]
  %s2 = inlined_call_operand.vmem [shape: bf16[64,128], index: 2, kind: input, shape index: {}, may-alias: {1,2}]
  %s3 = inlined_call_operand.vmem [shape: f32[1,8,128], index: 3, kind: output, shape index: {}]
  %s4 = sld [smem:[#allocation0]]
  $region30: #{dmon_forward.11} parent=0
    _
  %s6 = ssub.s32 1, %s4
  %s7 = scalar_select 0, %s6, %s4
  // Predicated region
  $region2: #{dmon_forward.11} parent=0 // pred_check
    _
  $region3: #{dmon_forward.11} parent=0 // pred_check_branch
    %9 = sbr.rel (0) target = $region5
  $region4: #{dmon_forward.11} parent=0 // pred_region
    _
  $region5: #{dmon_forward.11} parent=0 // pred_fallthru
    _
  // Predicated region
  $region6: #{dmon_forward.11} parent=0 // pred_check
    _
  $region7: #{dmon_forward.11} parent=0 // pred_check_branch
    %11 = sbr.rel (0) target = $region9
  $region8: #{dmon_forward.11} parent=0 // pred_region
    _
  $region9: #{dmon_forward.11} parent=0 // pred_fallthru
    _
  // Predicated region
  $region10: #{dmon_forward.11} parent=0 // pred_check
    _
  $region11: #{dmon_forward.11} parent=0 // pred_check_branch
    %13 = sbr.rel (0) target = $region13
  $region12: #{dmon_forward.11} parent=0 // pred_region
    _
  $region13: #{dmon_forward.11} parent=0 // pred_fallthru
    _
  %p15 = scmp.eq.s32.totalorder 0, 0
  // Predicated region
  $region14: #{dmon_forward.11} parent=0 // pred_check
    %p16 = pneg %p15
  $region15: #{dmon_forward.11} parent=0 // pred_check_branch
    %18 = sbr.rel (%p16) target = $region17
  $region16: #{dmon_forward.11} parent=0 // pred_region
    %19 = vst [vmem:[#allocation2] sm:$0xff] 0.0
    %20 = vst [vmem:[#allocation2 + $0x8] sm:$0xff] 0.0
    %21 = vst [vmem:[#allocation2 + $0x10] sm:$0xff] 0.0
    %22 = vst [vmem:[#allocation2 + $0x18] sm:$0xff] 0.0
    %23 = vst [vmem:[#allocation2 + $0x20] sm:$0xff] 0.0
    %24 = vst [vmem:[#allocation2 + $0x28] sm:$0xff] 0.0
    %25 = vst [vmem:[#allocation2 + $0x30] sm:$0xff] 0.0
    %26 = vst [vmem:[#allocation2 + $0x38] sm:$0xff] 0.0
  $region17: #{dmon_forward.11} parent=0 // pred_fallthru
    _
  %v27 = vld [vmem:[%s0] sm:$0xf]
  %v28 = vld [vmem:[%s0 + $0x4] sm:$0xf]
  %v29 = vld [vmem:[%s0 + $0x8] sm:$0xf]
  %v30 = vld [vmem:[%s0 + $0xc] sm:$0xf]
  %v31 = vld [vmem:[%s0 + $0x10] sm:$0xf]
  %v32 = vld [vmem:[%s0 + $0x14] sm:$0xf]
  %v33 = vld [vmem:[%s0 + $0x18] sm:$0xf]
  %v34 = vld [vmem:[%s0 + $0x1c] sm:$0xf]
  %v35 = vld [vmem:[%s1] sm:$0xf]
  %v36 = vld [vmem:[%s1 + $0x4] sm:$0xf]
  %v37 = vld [vmem:[%s1 + $0x8] sm:$0xf]
  %v38 = vld [vmem:[%s1 + $0xc] sm:$0xf]
  %v39 = vld [vmem:[%s1 + $0x10] sm:$0xf]
  %v40 = vld [vmem:[%s1 + $0x14] sm:$0xf]
  %v41 = vld [vmem:[%s1 + $0x18] sm:$0xf]
  %v42 = vld [vmem:[%s1 + $0x1c] sm:$0xf]
  %v51 = vunpack.c.l.b16 %v27
  %v52 = vunpack.c.l.b16 %v28
  %v53 = vunpack.c.l.b16 %v29
  %v54 = vunpack.c.l.b16 %v30
  %v55 = vunpack.c.l.b16 %v31
  %v56 = vunpack.c.l.b16 %v32
  %v57 = vunpack.c.l.b16 %v33
  %v58 = vunpack.c.l.b16 %v34
  %v59 = vpack.c.b16 %v52, %v51
  %v60 = vpack.c.b16 %v54, %v53
  %v61 = vpack.c.b16 %v56, %v55
  %v62 = vpack.c.b16 %v58, %v57
  %v71 = vunpack.c.l.b16 %v35
  %v72 = vunpack.c.l.b16 %v36
  %v73 = vunpack.c.l.b16 %v37
  %v74 = vunpack.c.l.b16 %v38
  %v75 = vunpack.c.l.b16 %v39
  %v76 = vunpack.c.l.b16 %v40
  %v77 = vunpack.c.l.b16 %v41
  %v78 = vunpack.c.l.b16 %v42
  %v79 = vpack.c.b16 %v72, %v71
  %v80 = vpack.c.b16 %v74, %v73
  %v81 = vpack.c.b16 %v76, %v75
  %v82 = vpack.c.b16 %v78, %v77
  %vm87 = vcmask 523264
  %v89 = vsel %vm87, %v59, 0
  %v92 = vsel %vm87, %v60, 0
  %v95 = vsel %vm87, %v61, 0
  %v98 = vsel %vm87, %v62, 0
  %100 = vmatprep.subr.bf16.mxu0 0
  %101 = vmatpush1.bf16.msra.mxu0 %v79
  %102 = vmatprep.subr.bf16.mxu0 0
  %103 = vmatpush1.bf16.msra.mxu0 %v80
  %104 = vmatprep.subr.bf16.mxu0 0
  %105 = vmatpush1.bf16.msra.mxu0 %v81
  %106 = vmatprep.subr.bf16.mxu0 0
  %107 = vmatpush1.bf16.msra.mxu0 %v82
  %108 = vmatprep.subr.bf16.mxu0 0
  %109 = vmatpush1.bf16.msra.mxu0 0
  %110 = vmatprep.subr.bf16.mxu0 0
  %111 = vmatpush1.bf16.msra.mxu0 0
  %112 = vmatprep.subr.bf16.mxu0 0
  %113 = vmatpush1.bf16.msra.mxu0 0
  %114 = vmatprep.subr.bf16.mxu0 0
  %115 = vmatpush1.bf16.msra.mxu0 0
  %116 = vmatprep.subr.bf16.mxu0 0
  %117 = vmatpush1.bf16.msra.mxu0 0
  %118 = vmatprep.subr.bf16.mxu0 0
  %119 = vmatpush1.bf16.msra.mxu0 0
  %120 = vmatprep.subr.bf16.mxu0 0
  %121 = vmatpush1.bf16.msra.mxu0 0
  %122 = vmatprep.subr.bf16.mxu0 0
  %123 = vmatpush1.bf16.msra.mxu0 0
  %124 = vmatprep.subr.bf16.mxu0 0
  %125 = vmatpush1.bf16.msra.mxu0 0
  %126 = vmatprep.subr.bf16.mxu0 0
  %127 = vmatpush1.bf16.msra.mxu0 0
  %128 = vmatprep.subr.bf16.mxu0 0
  %129 = vmatpush1.bf16.msra.mxu0 0
  %130 = vmatprep.subr.bf16.mxu0 0
  %131 = vmatpush1.bf16.msra.mxu0 0
  %132 = vmatprep.mubr.bf16.mxu0 0
  %133 = vmatmul.mubr.bf16.gmra.mrb[0].mxu0 %v89
  %v134 = vpop.f32.mrb[0].mxu0
  %v135 = vadd.f32 0.0, %v134
  %v136 = vpop.f32.mrb[0].mxu0
  %v137 = vpop.f32.mrb[0].mxu0
  %v138 = vadd.f32 0.0, %v137
  %v139 = vpop.f32.mrb[0].mxu0
  %140 = vmatprep.mubr.bf16.mxu0 0
  %141 = vmatmul.mubr.bf16.gmra.mrb[0].mxu0 %v92
  %v142 = vpop.f32.mrb[0].mxu0
  %v143 = vadd.f32 0.0, %v142
  %v144 = vpop.f32.mrb[0].mxu0
  %v145 = vpop.f32.mrb[0].mxu0
  %v146 = vadd.f32 0.0, %v145
  %v147 = vpop.f32.mrb[0].mxu0
  %148 = vmatprep.mubr.bf16.mxu0 0
  %149 = vmatmul.mubr.bf16.gmra.mrb[0].mxu0 %v95
  %v150 = vpop.f32.mrb[0].mxu0
  %v151 = vadd.f32 0.0, %v150
  %v152 = vpop.f32.mrb[0].mxu0
  %v153 = vpop.f32.mrb[0].mxu0
  %v154 = vadd.f32 0.0, %v153
  %v155 = vpop.f32.mrb[0].mxu0
  %156 = vmatprep.mubr.bf16.mxu0 0
  %157 = vmatmul.mubr.bf16.gmra.mrb[0].mxu0 %v98
  %v158 = vpop.f32.mrb[0].mxu0
  %v159 = vadd.f32 0.0, %v158
  %v160 = vpop.f32.mrb[0].mxu0
  %v161 = vpop.f32.mrb[0].mxu0
  %v162 = vadd.f32 0.0, %v161
  %v163 = vpop.f32.mrb[0].mxu0
  %164 = vdwg.mxu0
  %v165 = vld [vmem:[#allocation2] sm:$0xff]
  %v166 = vld [vmem:[#allocation2 + $0x8] sm:$0xff]
  %v167 = vld [vmem:[#allocation2 + $0x10] sm:$0xff]
  %v168 = vld [vmem:[#allocation2 + $0x18] sm:$0xff]
  %v169 = vld [vmem:[#allocation2 + $0x20] sm:$0xff]
  %v170 = vld [vmem:[#allocation2 + $0x28] sm:$0xff]
  %v171 = vld [vmem:[#allocation2 + $0x30] sm:$0xff]
  %v172 = vld [vmem:[#allocation2 + $0x38] sm:$0xff]
  %v173 = vld [vmem:[%s2] sm:$0xf]
  %v174 = vld [vmem:[%s2 + $0x4] sm:$0xf]
  %v175 = vld [vmem:[%s2 + $0x8] sm:$0xf]
  %v176 = vld [vmem:[%s2 + $0xc] sm:$0xf]
  %v177 = vld [vmem:[%s2 + $0x10] sm:$0xf]
  %v178 = vld [vmem:[%s2 + $0x14] sm:$0xf]
  %v179 = vld [vmem:[%s2 + $0x18] sm:$0xf]
  %v180 = vld [vmem:[%s2 + $0x1c] sm:$0xf]
  %v181 = vunpack.c.l.bf16 %v173
  %v182 = vunpack.c.l.bf16 %v174
  %v183 = vunpack.c.l.bf16 %v175
  %v184 = vunpack.c.l.bf16 %v176
  %v185 = vunpack.c.l.bf16 %v177
  %v186 = vunpack.c.l.bf16 %v178
  %v187 = vunpack.c.l.bf16 %v179
  %v188 = vunpack.c.l.bf16 %v180
  %v189 = vmul.f32 %v181, %v135
  %v190 = vmul.f32 %v182, %v138
  %v191 = vmul.f32 %v183, %v143
  %v192 = vmul.f32 %v184, %v146
  %v193 = vmul.f32 %v185, %v151
  %v194 = vmul.f32 %v186, %v154
  %v195 = vmul.f32 %v187, %v159
  %v196 = vmul.f32 %v188, %v162
  %v197 = vadd.f32 %v165, %v189
  %v198 = vadd.f32 %v166, %v190
  %v199 = vadd.f32 %v167, %v191
  %v200 = vadd.f32 %v168, %v192
  %v201 = vadd.f32 %v169, %v193
  %v202 = vadd.f32 %v170, %v194
  %v203 = vadd.f32 %v171, %v195
  %v204 = vadd.f32 %v172, %v196
  %205 = vst [vmem:[#allocation2] sm:$0xff] %v197
  %206 = vst [vmem:[#allocation2 + $0x8] sm:$0xff] %v198
  %207 = vst [vmem:[#allocation2 + $0x10] sm:$0xff] %v199
  %208 = vst [vmem:[#allocation2 + $0x18] sm:$0xff] %v200
  %209 = vst [vmem:[#allocation2 + $0x20] sm:$0xff] %v201
  %210 = vst [vmem:[#allocation2 + $0x28] sm:$0xff] %v202
  %211 = vst [vmem:[#allocation2 + $0x30] sm:$0xff] %v203
  %212 = vst [vmem:[#allocation2 + $0x38] sm:$0xff] %v204
  // Predicated region
  $region18: #{dmon_forward.11} parent=0 // pred_check
    %p213 = pneg %p15
  $region19: #{dmon_forward.11} parent=0 // pred_check_branch
    %215 = sbr.rel (%p213) target = $region21
  $region20: #{dmon_forward.11} parent=0 // pred_region
    %v216 = vld [vmem:[#allocation2] sm:$0xff]
    %v217 = vld [vmem:[#allocation2 + $0x8] sm:$0xff]
    %v218 = vld [vmem:[#allocation2 + $0x10] sm:$0xff]
    %v219 = vld [vmem:[#allocation2 + $0x18] sm:$0xff]
    %v220 = vld [vmem:[#allocation2 + $0x20] sm:$0xff]
    %v221 = vld [vmem:[#allocation2 + $0x28] sm:$0xff]
    %v222 = vld [vmem:[#allocation2 + $0x30] sm:$0xff]
    %v223 = vld [vmem:[#allocation2 + $0x38] sm:$0xff]
    %v224 = vadd.f32 %v216, %v217
    %v225 = vadd.f32 %v224, %v218
    %v226 = vadd.f32 %v225, %v219
    %v227 = vadd.f32 %v226, %v220
    %v228 = vadd.f32 %v227, %v221
    %v229 = vadd.f32 %v228, %v222
    %v230 = vadd.f32 %v229, %v223
    %231 = vadd.xlane.f32.xlu0 %v230
    %v232 = vpop.xlane.xlu0 %231
    %v233 = vrot.slane %v232, 4
    %v234 = vadd.f32 %v232, %v233
    %v235 = vrot.slane %v234, 2
    %v236 = vadd.f32 %v234, %v235
    %v237 = vrot.slane %v236, 1
    %v238 = vadd.f32 %v236, %v237
    %s239 = vtos %v238
    %v240 = vstv %s239
    %v241 = vadd.f32 %v240, 0.0
    %242 = vst [vmem:[%s3] sm:$0xff] %v241
  $region21: #{dmon_forward.11} parent=0 // pred_fallthru
    _
  // Predicated region
  $region22: #{dmon_forward.11} parent=0 // pred_check
    _
  $region23: #{dmon_forward.11} parent=0 // pred_check_branch
    %244 = sbr.rel (0) target = $region25
  $region24: #{dmon_forward.11} parent=0 // pred_region
    _
  $region25: #{dmon_forward.11} parent=0 // pred_fallthru
    _
  // Predicated region
  $region26: #{dmon_forward.11} parent=0 // pred_check
    _
  $region27: #{dmon_forward.11} parent=0 // pred_check_branch
    %246 = sbr.rel (0) target = $region29
  $region28: #{dmon_forward.11} parent=0 // pred_region
    _
  $region29: #{dmon_forward.11} parent=0 // pred_fallthru
    _

</llo_original>
